<compile_context>
chip_gen: v7x
topology: tpu7x:2x2x1
jax: 0.10.0
libtpu: 0.0.40
codegen_flags: <defaults>
</compile_context>

<pallas_src>
import functools

import jax
import jax.numpy as jnp
from jax.experimental import pallas as pl
from jax.experimental.pallas import tpu as pltpu


# ---------------------------------------------------------------------------
# Pallas kernel: fused IN + LN blend + affine for a block of `bn` samples
# ---------------------------------------------------------------------------
def _lin_kernel(x_ref, rho_ref, gamma_ref, beta_ref, o_ref, *, eps, c, hw):
    x = x_ref[...].astype(jnp.float32)                       # (bn, C, HW)

    # --- instance-norm stats: per (sample, channel) over H*W (lane reduce) --
    in_mean = jnp.mean(x, axis=-1, keepdims=True)             # (bn, C, 1)
    d = x - in_mean
    in_ssq = jnp.sum(d * d, axis=-1, keepdims=True)           # (bn, C, 1)
    inv_in = jax.lax.rsqrt(in_ssq * (1.0 / (hw - 1)) + eps)   # EUP rsqrt

    # --- layer-norm stats derived exactly from the per-channel sums ---------
    #   sum_{c,hw}(x - ln_mean)^2 = sum_c [ in_ssq_c + HW*(in_mean_c-ln_mean)^2 ]
    ln_mean = jnp.mean(in_mean, axis=1, keepdims=True)         # (bn, 1, 1)
    dm = in_mean - ln_mean
    ln_ssq = jnp.sum(in_ssq + hw * dm * dm, axis=1, keepdims=True)
    inv_ln = jax.lax.rsqrt(ln_ssq * (1.0 / (c * hw - 1)) + eps)  # (bn, 1, 1)

    # --- fold blend + affine into one per-channel FMA:  out = x*scale + bias -
    #   out = a*(x-in_mean)*inv_in + b*(x-ln_mean)*inv_ln + beta,
    #   a = rho*gamma, b = (1-rho)*gamma
    rho = rho_ref[...]                                          # (C, 1)
    gamma = gamma_ref[...]
    beta = beta_ref[...]
    a = rho * gamma
    b = gamma - a
    w_in = a * inv_in                                           # (bn, C, 1)
    w_ln = b * inv_ln                                           # (bn, C, 1)
    scale = w_in + w_ln
    bias = beta - (w_in * in_mean + w_ln * ln_mean)
    o_ref[...] = (x * scale + bias).astype(o_ref.dtype)


# ---------------------------------------------------------------------------
# Wrapper: NCHW in, NCHW out (free reshape only — no transposes / HBM copies)
# ---------------------------------------------------------------------------
def lin_forward(x, rho, gamma, beta, *, eps=1e-5, vmem_budget_bytes=8 << 20):
    """LIN.forward.  x: (N, C, H, W); rho/gamma/beta: (1, C, 1, 1)."""
    N, C, H, W = x.shape
    HW = H * W

    x3 = x.reshape(N, C, HW)                 # keeps C-major layout, lane-dense HW
    rho2 = rho.reshape(C, 1).astype(jnp.float32)
    gamma2 = gamma.reshape(C, 1).astype(jnp.float32)
    beta2 = beta.reshape(C, 1).astype(jnp.float32)

    # Samples per grid step: amortize per-step pipeline overhead while keeping
    # the double-buffered input + output blocks (plus f32 temps) inside VMEM.
    per_sample_bytes = C * HW * 4
    cap = max(1, vmem_budget_bytes // (4 * per_sample_bytes))
    bn = min(N, cap)
    while N % bn:                            # exact blocks -> no padded-tail stats
        bn -= 1
    grid = (N // bn,)

    # TODO(synk): if a SINGLE sample (C*H*W*4B) ever exceeds the VMEM budget,
    # switch to a two-pass (stats-then-normalize) grid tiled over H*W; at these
    # sizes the whole block is a few KiB so the single-pass kernel is optimal.
    out = pl.pallas_call(
        functools.partial(_lin_kernel, eps=float(eps), c=C, hw=HW),
        out_shape=jax.ShapeDtypeStruct((N, C, HW), x.dtype),
        grid_spec=pltpu.PrefetchScalarGridSpec(
            num_scalar_prefetch=0,
            grid=grid,
            in_specs=[
                pl.BlockSpec((bn, C, HW), lambda i: (i, 0, 0)),  # x block
                pl.BlockSpec((C, 1), lambda i: (0, 0)),          # rho
                pl.BlockSpec((C, 1), lambda i: (0, 0)),          # gamma
                pl.BlockSpec((C, 1), lambda i: (0, 0)),          # beta
            ],
            out_specs=pl.BlockSpec((bn, C, HW), lambda i: (i, 0, 0)),
        ),
        compiler_params=pltpu.CompilerParams(
            dimension_semantics=("parallel",),
        ),
    )(x3, rho2, gamma2, beta2)

    return out.reshape(N, C, H, W)


# ---------------------------------------------------------------------------
if __name__ == "__main__":
    # Module config: LIN(num_features=4, eps=1e-5) on a (2, 4, 16, 16) input.
    N, C, H, W = 2, 4, 16, 16
    eps = 1e-5

    key = jax.random.PRNGKey(0)
    kx, kr, kg, kb = jax.random.split(key, 4)
    x = jax.random.normal(kx, (N, C, H, W), jnp.float32)
    # The module initializes rho=0, gamma=1, beta=0; use random (deterministic)
    # values so both norm branches and the affine are actually exercised.
    rho = jax.random.uniform(kr, (1, C, 1, 1), jnp.float32, 0.0, 1.0)
    gamma = jax.random.normal(kg, (1, C, 1, 1), jnp.float32) * 0.1 + 1.0
    beta = jax.random.normal(kb, (1, C, 1, 1), jnp.float32) * 0.1

    out = lin_forward(x, rho, gamma, beta, eps=eps)
    out = jax.block_until_ready(out)

    # Pure-JAX reference replicating the PyTorch forward (torch.var unbiased).
    in_mean = jnp.mean(x, axis=(2, 3), keepdims=True)
    in_var = jnp.var(x, axis=(2, 3), keepdims=True, ddof=1)
    out_in = (x - in_mean) / jnp.sqrt(in_var + eps)
    ln_mean = jnp.mean(x, axis=(1, 2, 3), keepdims=True)
    ln_var = jnp.var(x, axis=(1, 2, 3), keepdims=True, ddof=1)
    out_ln = (x - ln_mean) / jnp.sqrt(ln_var + eps)
    ref = rho * out_in + (1.0 - rho) * out_ln
    ref = ref * gamma + beta

    assert out.shape == (N, C, H, W)
    assert jnp.allclose(out, ref, atol=1e-5, rtol=1e-4), (
        float(jnp.max(jnp.abs(out - ref)))
    )

    print("KERNEL_OK")
</pallas_src>

<mosaic_0001>
module attributes {stable_mosaic.version = 11 : i64} {
  func.func @_lin_kernel(%arg0: i32, %arg1: memref<2x4x256xf32, #tpu.memory_space<vmem>>, %arg2: memref<4x1xf32, #tpu.memory_space<vmem>>, %arg3: memref<4x1xf32, #tpu.memory_space<vmem>>, %arg4: memref<4x1xf32, #tpu.memory_space<vmem>>, %arg5: memref<2x4x256xf32, #tpu.memory_space<vmem>>) attributes {dimension_semantics = [#tpu.dimension_semantics<parallel>], iteration_bounds = array<i64: 1>, scalar_prefetch = 0 : i64, scratch_operands = 0 : i64, tpu.core_type = #tpu.core_type<tc>, window_params = [{transform_indices = @transform_0, window_bounds = array<i64: 2, 4, 256>}, {pipeline_mode = #tpu.pipeline_mode<synchronous>, transform_indices = @transform_1, window_bounds = array<i64: 4, 1>}, {pipeline_mode = #tpu.pipeline_mode<synchronous>, transform_indices = @transform_2, window_bounds = array<i64: 4, 1>}, {pipeline_mode = #tpu.pipeline_mode<synchronous>, transform_indices = @transform_3, window_bounds = array<i64: 4, 1>}, {transform_indices = @transform_4, window_bounds = array<i64: 2, 4, 256>}]} {
    %c0 = arith.constant 0 : index
    %c0_0 = arith.constant 0 : index
    %c0_1 = arith.constant 0 : index
    %0 = vector.load %arg1[%c0, %c0_0, %c0_1] : memref<2x4x256xf32, #tpu.memory_space<vmem>>, vector<2x4x256xf32>
    %cst = arith.constant dense<0.000000e+00> : vector<2x4xf32>
    %1 = vector.multi_reduction <add>, %0, %cst [2] : vector<2x4x256xf32> to vector<2x4xf32>
    %2 = vector.shape_cast %1 : vector<2x4xf32> to vector<2x4x1xf32>
    %cst_2 = arith.constant 2.560000e+02 : f32
    %3 = vector.broadcast %cst_2 : f32 to vector<2x4x1xf32>
    %4 = arith.divf %2, %3 : vector<2x4x1xf32>
    %5 = vector.broadcast %4 : vector<2x4x1xf32> to vector<2x4x256xf32>
    %6 = arith.subf %0, %5 : vector<2x4x256xf32>
    %7 = arith.mulf %6, %6 : vector<2x4x256xf32>
    %cst_3 = arith.constant dense<0.000000e+00> : vector<2x4xf32>
    %8 = vector.multi_reduction <add>, %7, %cst_3 [2] : vector<2x4x256xf32> to vector<2x4xf32>
    %9 = vector.shape_cast %8 : vector<2x4xf32> to vector<2x4x1xf32>
    %cst_4 = arith.constant 0.00392156886 : f32
    %10 = vector.broadcast %cst_4 : f32 to vector<2x4x1xf32>
    %11 = arith.mulf %9, %10 : vector<2x4x1xf32>
    %cst_5 = arith.constant 9.99999974E-6 : f32
    %12 = vector.broadcast %cst_5 : f32 to vector<2x4x1xf32>
    %13 = arith.addf %11, %12 : vector<2x4x1xf32>
    %14 = math.rsqrt %13 : vector<2x4x1xf32>
    %cst_6 = arith.constant dense<0.000000e+00> : vector<2x1xf32>
    %15 = vector.multi_reduction <add>, %4, %cst_6 [1] : vector<2x4x1xf32> to vector<2x1xf32>
    %16 = vector.shape_cast %15 : vector<2x1xf32> to vector<2x1x1xf32>
    %cst_7 = arith.constant 4.000000e+00 : f32
    %17 = vector.broadcast %cst_7 : f32 to vector<2x1x1xf32>
    %18 = arith.divf %16, %17 : vector<2x1x1xf32>
    %19 = vector.broadcast %18 : vector<2x1x1xf32> to vector<2x4x1xf32>
    %20 = arith.subf %4, %19 : vector<2x4x1xf32>
    %cst_8 = arith.constant 2.560000e+02 : f32
    %21 = vector.broadcast %cst_8 : f32 to vector<2x4x1xf32>
    %22 = arith.mulf %21, %20 : vector<2x4x1xf32>
    %23 = arith.mulf %22, %20 : vector<2x4x1xf32>
    %24 = arith.addf %9, %23 : vector<2x4x1xf32>
    %cst_9 = arith.constant dense<0.000000e+00> : vector<2x1xf32>
    %25 = vector.multi_reduction <add>, %24, %cst_9 [1] : vector<2x4x1xf32> to vector<2x1xf32>
    %26 = vector.shape_cast %25 : vector<2x1xf32> to vector<2x1x1xf32>
    %cst_10 = arith.constant 9.77517105E-4 : f32
    %27 = vector.broadcast %cst_10 : f32 to vector<2x1x1xf32>
    %28 = arith.mulf %26, %27 : vector<2x1x1xf32>
    %cst_11 = arith.constant 9.99999974E-6 : f32
    %29 = vector.broadcast %cst_11 : f32 to vector<2x1x1xf32>
    %30 = arith.addf %28, %29 : vector<2x1x1xf32>
    %31 = math.rsqrt %30 : vector<2x1x1xf32>
    %c0_12 = arith.constant 0 : index
    %c0_13 = arith.constant 0 : index
    %32 = vector.load %arg2[%c0_12, %c0_13] : memref<4x1xf32, #tpu.memory_space<vmem>>, vector<4x1xf32>
    %c0_14 = arith.constant 0 : index
    %c0_15 = arith.constant 0 : index
    %33 = vector.load %arg3[%c0_14, %c0_15] : memref<4x1xf32, #tpu.memory_space<vmem>>, vector<4x1xf32>
    %c0_16 = arith.constant 0 : index
    %c0_17 = arith.constant 0 : index
    %34 = vector.load %arg4[%c0_16, %c0_17] : memref<4x1xf32, #tpu.memory_space<vmem>>, vector<4x1xf32>
    %35 = arith.mulf %32, %33 : vector<4x1xf32>
    %36 = arith.subf %33, %35 : vector<4x1xf32>
    %37 = vector.shape_cast %35 : vector<4x1xf32> to vector<1x4x1xf32>
    %38 = vector.broadcast %37 : vector<1x4x1xf32> to vector<2x4x1xf32>
    %39 = arith.mulf %38, %14 : vector<2x4x1xf32>
    %40 = vector.shape_cast %36 : vector<4x1xf32> to vector<1x4x1xf32>
    %41 = vector.broadcast %40 : vector<1x4x1xf32> to vector<2x4x1xf32>
    %42 = vector.broadcast %31 : vector<2x1x1xf32> to vector<2x4x1xf32>
    %43 = arith.mulf %41, %42 : vector<2x4x1xf32>
    %44 = arith.addf %39, %43 : vector<2x4x1xf32>
    %45 = arith.mulf %39, %4 : vector<2x4x1xf32>
    %46 = vector.broadcast %18 : vector<2x1x1xf32> to vector<2x4x1xf32>
    %47 = arith.mulf %43, %46 : vector<2x4x1xf32>
    %48 = arith.addf %45, %47 : vector<2x4x1xf32>
    %49 = vector.shape_cast %34 : vector<4x1xf32> to vector<1x4x1xf32>
    %50 = vector.broadcast %49 : vector<1x4x1xf32> to vector<2x4x1xf32>
    %51 = arith.subf %50, %48 : vector<2x4x1xf32>
    %52 = vector.broadcast %44 : vector<2x4x1xf32> to vector<2x4x256xf32>
    %53 = arith.mulf %0, %52 : vector<2x4x256xf32>
    %54 = vector.broadcast %51 : vector<2x4x1xf32> to vector<2x4x256xf32>
    %55 = arith.addf %53, %54 : vector<2x4x256xf32>
    %c0_18 = arith.constant 0 : index
    %c0_19 = arith.constant 0 : index
    %c0_20 = arith.constant 0 : index
    %56 = vector.load %arg5[%c0_18, %c0_19, %c0_20] : memref<2x4x256xf32, #tpu.memory_space<vmem>>, vector<2x4x256xf32>
    tpu.vector_store %arg5[%c0_18, %c0_19, %c0_20], %55 {strides = array<i32>} : memref<2x4x256xf32, #tpu.memory_space<vmem>>, vector<2x4x256xf32>,
    return
  }
  func.func @transform_0(%arg0: i32) -> (i32, i32, i32) {
    %c0_i32 = arith.constant 0 : i32
    %c0_i32_0 = arith.constant 0 : i32
    %c0_i32_1 = arith.constant 0 : i32
    return %arg0, %c0_i32, %c0_i32_0 : i32, i32, i32
  }
  func.func @transform_1(%arg0: i32) -> (i32, i32) {
    %c0_i32 = arith.constant 0 : i32
    %c0_i32_0 = arith.constant 0 : i32
    %c0_i32_1 = arith.constant 0 : i32
    return %c0_i32, %c0_i32_0 : i32, i32
  }
  func.func @transform_2(%arg0: i32) -> (i32, i32) {
    %c0_i32 = arith.constant 0 : i32
    %c0_i32_0 = arith.constant 0 : i32
    %c0_i32_1 = arith.constant 0 : i32
    return %c0_i32, %c0_i32_0 : i32, i32
  }
  func.func @transform_3(%arg0: i32) -> (i32, i32) {
    %c0_i32 = arith.constant 0 : i32
    %c0_i32_0 = arith.constant 0 : i32
    %c0_i32_1 = arith.constant 0 : i32
    return %c0_i32, %c0_i32_0 : i32, i32
  }
  func.func @transform_4(%arg0: i32) -> (i32, i32, i32) {
    %c0_i32 = arith.constant 0 : i32
    %c0_i32_0 = arith.constant 0 : i32
    %c0_i32_1 = arith.constant 0 : i32
    return %arg0, %c0_i32, %c0_i32_0 : i32, i32, i32
  }
}

</mosaic_0001>

<llo_original>
// kernel: tpu_custom_call.1
$region0: #{tpu_custom_call.1}
  #allocation0 [shape = 'u32[]', space=smem, size = 0x4, offset = 0x4, fixed_abs, tag = 'smem constant byte address 0x4 - core index']
  #allocation1 [shape = 'u32[144,128]{1,0:T(1,128)}', space=vmem, size = 0x12000, scoped, tag = 'internal scratch']
  %s0 = inlined_call_operand.hbm [shape: f32[2,4,256], index: 0, kind: input, shape index: {}]
  %s1 = inlined_call_operand.vmem [shape: f32[4,1], index: 1, kind: input, shape index: {}]
  %s2 = inlined_call_operand.vmem [shape: f32[4,1], index: 2, kind: input, shape index: {}]
  %s3 = inlined_call_operand.vmem [shape: f32[4,1], index: 3, kind: input, shape index: {}]
  %s4 = inlined_call_operand.hbm [shape: f32[2,4,256], index: 4, kind: output, shape index: {}]
  %s5 = sld [smem:[#allocation0]]
  $region30: #{tpu_custom_call.1} parent=0
    _
  %s7 = ssub.s32 1, %s5
  %s8 = scalar_select 0, %s7, %s5
  $region1: #{tpu_custom_call.1} parent=0
    #allocation2 [shape = 'u8[8192]{0}', space=vmem, size = 0x2000, scoped, tag = 'input window, operand 0, single buffered']
    #allocation3 [shape = 's32[1]{0}', space=sflag, size = 0x4, scoped, tag = 'scoped memory for tpu_custom_call.1']
    #allocation4 [shape = 's32[1]{0}', space=sflag, size = 0x4, scoped, tag = 'scoped memory for tpu_custom_call.1']
    #allocation5 [shape = 'u8[8192]{0}', space=vmem, size = 0x2000, scoped, tag = 'output window, operand 0, single buffered']
    %9 = vsyncpa [#allocation3], 0
    %10 = vsyncpa [#allocation4], 0
    // Predicated region
    $region2: #{tpu_custom_call.1} parent=1 // pred_check
      _
    $region3: #{tpu_custom_call.1} parent=1 // pred_check_branch
      %12 = sbr.rel (0) target = $region5
    $region4: #{tpu_custom_call.1} parent=1 // pred_region
      %s14 = ssub.s32 256, 256
      %15 = vsyncadd [#allocation3], %s14
      %s16 = sshll.u32 [#allocation2], 4
      %s17 = int_to_ptr.vmem [resolvable:$true] %s16
      %22 = dma.hbm_to_vmem [thread:$0]  %s0, 256, %s17, [#allocation3], 128, 128, 8
    $region5: #{tpu_custom_call.1} parent=1 // pred_fallthru
      _
    // Predicated region
    $region6: #{tpu_custom_call.1} parent=1 // pred_check
      _
    $region7: #{tpu_custom_call.1} parent=1 // pred_check_branch
      %24 = sbr.rel (0) target = $region9
    $region8: #{tpu_custom_call.1} parent=1 // pred_region
      _
    $region9: #{tpu_custom_call.1} parent=1 // pred_fallthru
      _
    // Predicated region
    $region10: #{tpu_custom_call.1} parent=1 // pred_check
      _
    $region11: #{tpu_custom_call.1} parent=1 // pred_check_branch
      %26 = sbr.rel (0) target = $region13
    $region12: #{tpu_custom_call.1} parent=1 // pred_region
      _
    $region13: #{tpu_custom_call.1} parent=1 // pred_fallthru
      _
    // Predicated region
    $region14: #{tpu_custom_call.1} parent=1 // pred_check
      _
    $region15: #{tpu_custom_call.1} parent=1 // pred_check_branch
      %28 = sbr.rel (0) target = $region17
    $region16: #{tpu_custom_call.1} parent=1 // pred_region
      _
    $region17: #{tpu_custom_call.1} parent=1 // pred_fallthru
      _
    // Predicated region
    $region18: #{tpu_custom_call.1} parent=1 // pred_check
      _
    $region19: #{tpu_custom_call.1} parent=1 // pred_check_branch
      %30 = sbr.rel (0) target = $region21
    $region20: #{tpu_custom_call.1} parent=1 // pred_region
      %31 = dma.done [#allocation3], 256
    $region21: #{tpu_custom_call.1} parent=1 // pred_fallthru
      _
    %v32 = vld [vmem:[#allocation2] sm:$0xff]
    %v33 = vld [vmem:[#allocation2 + $0x8] sm:$0xff]
    %v36 = vcombine.high %v32, %v32
    %v37 = vcombine.high %v33, %v33
    %vm40 = vcmask 1043456
    %v41 = vsel %vm40, %v32, 0.0
    %v42 = vsel %vm40, %v36, 0.0
    %v43 = vadd.f32 %v41, %v42
    %44 = vadd.xlane.f32.xlu0 %v43
    %v45 = vpop.xlane.xlu0 %44
    %v46 = vsel %vm40, %v33, 0.0
    %v47 = vsel %vm40, %v37, 0.0
    %v48 = vadd.f32 %v46, %v47
    %49 = vadd.xlane.f32.xlu0 %v48
    %v50 = vpop.xlane.xlu0 %49
    %v51 = vrcp.pop 256.0
    %v52 = vmul.f32 %v45, %v51
    %v53 = vmul.f32 %v50, %v51
    %v57 = vunpack.c.l.s4 839922192
    %v58 = vunpack.c.0.s8 %v57
    %v59 = vlaneseq
    %v60 = vshrl.u32 %v59, 7
    %v61 = vsub.s32 %v58, %v60
    %v62 = vrot.slane %v52, %v61
    %v64 = vunpack.c.l.s4 839922192
    %v65 = vunpack.c.0.s8 %v64
    %v66 = vlaneseq
    %v67 = vshrl.u32 %v66, 7
    %v68 = vsub.s32 %v65, %v67
    %v69 = vrot.slane %v53, %v68
    %v72 = vsub.f32 %v32, %v62
    %v73 = vsub.f32 %v33, %v69
    %v74 = vmul.f32 %v72, %v72
    %v75 = vmul.f32 %v73, %v73
    %v78 = vcombine.high %v74, %v74
    %v79 = vcombine.high %v75, %v75
    %v82 = vsel %vm40, %v74, 0.0
    %v83 = vsel %vm40, %v78, 0.0
    %v84 = vadd.f32 %v82, %v83
    %85 = vadd.xlane.f32.xlu0 %v84
    %v86 = vpop.xlane.xlu0 %85
    %v87 = vsel %vm40, %v75, 0.0
    %v88 = vsel %vm40, %v79, 0.0
    %v89 = vadd.f32 %v87, %v88
    %90 = vadd.xlane.f32.xlu0 %v89
    %v91 = vpop.xlane.xlu0 %90
    %v92 = vmul.f32 %v86, 0.003921569
    %v93 = vmul.f32 %v91, 0.003921569
    %v94 = vadd.f32 %v92, 1e-05
    %v95 = vadd.f32 %v93, 1e-05
    %v96 = vrsqrt.pop %v94
    %v97 = vrsqrt.pop %v95
    %v98 = vsel %vm40, %v52, 0.0
    %v99 = vrot.slane %v98, 4
    %v100 = vadd.f32 %v98, %v99
    %v101 = vrot.slane %v100, 2
    %v102 = vadd.f32 %v100, %v101
    %v103 = vrot.slane %v102, 1
    %v104 = vadd.f32 %v102, %v103
    %v105 = vsel %vm40, %v53, 0.0
    %v106 = vrot.slane %v105, 4
    %v107 = vadd.f32 %v105, %v106
    %v108 = vrot.slane %v107, 2
    %v109 = vadd.f32 %v107, %v108
    %v110 = vrot.slane %v109, 1
    %v111 = vadd.f32 %v109, %v110
    %v112 = vrcp.pop 4.0
    %v113 = vmul.f32 %v104, %v112
    %v114 = vmul.f32 %v111, %v112
    %v115 = vsub.f32 %v52, %v113
    %v116 = vsub.f32 %v53, %v114
    %v117 = vmul.f32 %v115, 256.0
    %v118 = vmul.f32 %v116, 256.0
    %v119 = vmul.f32 %v117, %v115
    %v120 = vmul.f32 %v118, %v116
    %v121 = vadd.f32 %v86, %v119
    %v122 = vadd.f32 %v91, %v120
    %v123 = vsel %vm40, %v121, 0.0
    %v124 = vrot.slane %v123, 4
    %v125 = vadd.f32 %v123, %v124
    %v126 = vrot.slane %v125, 2
    %v127 = vadd.f32 %v125, %v126
    %v128 = vrot.slane %v127, 1
    %v129 = vadd.f32 %v127, %v128
    %v130 = vsel %vm40, %v122, 0.0
    %v131 = vrot.slane %v130, 4
    %v132 = vadd.f32 %v130, %v131
    %v133 = vrot.slane %v132, 2
    %v134 = vadd.f32 %v132, %v133
    %v135 = vrot.slane %v134, 1
    %v136 = vadd.f32 %v134, %v135
    %v137 = vmul.f32 %v129, 0.0009775171
    %v138 = vmul.f32 %v136, 0.0009775171
    %v139 = vadd.f32 %v137, 1e-05
    %v140 = vadd.f32 %v138, 1e-05
    %v141 = vrsqrt.pop %v139
    %v142 = vrsqrt.pop %v140
    %v143 = vld [vmem:[%s1] sm:$0xf]
    %v144 = vld [vmem:[%s2] sm:$0xf]
    %v145 = vld [vmem:[%s3] sm:$0xf]
    %v146 = vmul.f32 %v143, %v144
    %v147 = vsub.f32 %v144, %v146
    %v148 = vmul.f32 %v146, %v96
    %v149 = vmul.f32 %v146, %v97
    %v150 = vmul.f32 %v147, %v141
    %v151 = vmul.f32 %v147, %v142
    %v152 = vadd.f32 %v148, %v150
    %v153 = vadd.f32 %v149, %v151
    %v154 = vmul.f32 %v148, %v52
    %v155 = vmul.f32 %v149, %v53
    %v156 = vmul.f32 %v150, %v113
    %v157 = vmul.f32 %v151, %v114
    %v158 = vadd.f32 %v154, %v156
    %v159 = vadd.f32 %v155, %v157
    %v160 = vsub.f32 %v145, %v158
    %v161 = vsub.f32 %v145, %v159
    %163 = vset.pattern.permute.xlu0 0
    %164 = vperm.xlu0 %163, %v152
    %v165 = vpop.permute.xlu0 %164
    %167 = vset.pattern.permute.xlu0 0
    %168 = vperm.xlu0 %167, %v153
    %v169 = vpop.permute.xlu0 %168
    %v171 = vunpack.c.l.s4 839922192
    %v172 = vunpack.c.0.s8 %v171
    %v173 = vlaneseq
    %v174 = vshrl.u32 %v173, 7
    %v175 = vsub.s32 %v172, %v174
    %v176 = vrot.slane %v165, %v175
    %v178 = vunpack.c.l.s4 839922192
    %v179 = vunpack.c.0.s8 %v178
    %v180 = vlaneseq
    %v181 = vshrl.u32 %v180, 7
    %v182 = vsub.s32 %v179, %v181
    %v183 = vrot.slane %v169, %v182
    %v186 = vmul.f32 %v32, %v176
    %v187 = vmul.f32 %v33, %v183
    %189 = vset.pattern.permute.xlu0 0
    %190 = vperm.xlu0 %189, %v160
    %v191 = vpop.permute.xlu0 %190
    %193 = vset.pattern.permute.xlu0 0
    %194 = vperm.xlu0 %193, %v161
    %v195 = vpop.permute.xlu0 %194
    %v197 = vunpack.c.l.s4 839922192
    %v198 = vunpack.c.0.s8 %v197
    %v199 = vlaneseq
    %v200 = vshrl.u32 %v199, 7
    %v201 = vsub.s32 %v198, %v200
    %v202 = vrot.slane %v191, %v201
    %v204 = vunpack.c.l.s4 839922192
    %v205 = vunpack.c.0.s8 %v204
    %v206 = vlaneseq
    %v207 = vshrl.u32 %v206, 7
    %v208 = vsub.s32 %v205, %v207
    %v209 = vrot.slane %v195, %v208
    %v212 = vadd.f32 %v186, %v202
    %v213 = vadd.f32 %v187, %v209
    %214 = vst [vmem:[#allocation5] sm:$0xff] %v212
    %215 = vst [vmem:[#allocation5 + $0x8] sm:$0xff] %v213
    // Predicated region
    $region22: #{tpu_custom_call.1} parent=1 // pred_check
      _
    $region23: #{tpu_custom_call.1} parent=1 // pred_check_branch
      %217 = sbr.rel (0) target = $region25
    $region24: #{tpu_custom_call.1} parent=1 // pred_region
      %s219 = ssub.s32 256, 256
      %220 = vsyncadd [#allocation4], %s219
      %s221 = sshll.u32 [#allocation5], 4
      %s222 = int_to_ptr.vmem [resolvable:$true] %s221
      %227 = dma.vmem_to_hbm [thread:$0]  %s222, 256, %s4, [#allocation4], 128, 128, 8
    $region25: #{tpu_custom_call.1} parent=1 // pred_fallthru
      _
    // Predicated region
    $region26: #{tpu_custom_call.1} parent=1 // pred_check
      _
    $region27: #{tpu_custom_call.1} parent=1 // pred_check_branch
      %229 = sbr.rel (0) target = $region29
    $region28: #{tpu_custom_call.1} parent=1 // pred_region
      %230 = dma.done [#allocation4], 256
    $region29: #{tpu_custom_call.1} parent=1 // pred_fallthru
      _
    %231 = vsyncpa [#allocation3], 1
    %232 = vsyncpa [#allocation4], 1

</llo_original>
